<compile_context>
chip_gen: v5e
topology: v5e:2x2
jax: 0.10.0
libtpu: 0.0.40
codegen_flags: <defaults>
</compile_context>

<pallas_src>
import jax
import jax.numpy as jnp
from jax.experimental import pallas as pl
from jax.experimental.pallas import tpu as pltpu

B, CIN, H, W = 2, 3, 6, 6
C = 8                  # conv out-channels == BN channels == bilinear features
HP, WP = H + 2, W + 2  # spatial size after 1x1 conv with padding=1  -> 8, 8
M = HP                 # rows of x2's inner matrix; must equal HP
EPS = 1e-5
NLANE = B * HP * C     # 128 lanes: n = b*64 + h*8 + c
N_STAT = B * HP * WP   # 128 elements per channel for the BN statistics


def fused_kernel(lp_ref, x1rep_ref, gchan_ref, ggrp_ref, bd_ref,
                 blw2_ref, blb_ref, out_ref):
    # lane-parameter rows: [cw0, cw1, cw2, cb, gamma, beta, 0, 0], each (1,128)
    lp = lp_ref[...]                                            # (8, 128)

    # ---- conv1 (1x1, padded): 3 broadcast-FMAs, pure VPU, lane-dense -------
    v1 = (lp[0:1, :] * x1rep_ref[0]
          + lp[1:2, :] * x1rep_ref[1]
          + lp[2:3, :] * x1rep_ref[2]
          + lp[3:4, :])                                         # (8, 128)

    # ---- bn1: training-mode batch stats (two-pass variance) ----------------
    gchan = gchan_ref[...]                                      # (128, 128) 0/1
    inv_n = 1.0 / float(N_STAT)
    # per-channel sum, broadcast back to every lane of that channel
    mean = jnp.sum(jnp.dot(v1, gchan, preferred_element_type=jnp.float32),
                   axis=0, keepdims=True) * inv_n               # (1, 128)
    d = v1 - mean
    var = jnp.sum(jnp.dot(d * d, gchan, preferred_element_type=jnp.float32),
                  axis=0, keepdims=True) * inv_n                # (1, 128)
    scale = lp[4:5, :] * jax.lax.rsqrt(var + EPS)               # gamma * rsqrt
    v2 = d * scale + lp[5:6, :]                                 # (8, 128)

    # ---- softmax over channels (8 contiguous lanes per pixel group) --------
    ggrp = ggrp_ref[...]                                        # (128, 128) 0/1
    # per-pixel mean as a numerically-safe stabilizer (exact softmax math)
    pix_mean = jnp.dot(v2, ggrp, preferred_element_type=jnp.float32) * (1.0 / C)
    e = jnp.exp(v2 - pix_mean)
    den = jnp.dot(e, ggrp, preferred_element_type=jnp.float32)  # group sums
    v3 = e * pl.reciprocal(den, approx=True)                    # (8, 128)

    # ---- v4 = relu(x2 @ v3): one matmul vs. block-diagonal x2 --------------
    v4 = jnp.maximum(
        jnp.dot(v3, bd_ref[...], preferred_element_type=jnp.float32), 0.0)

    # ---- bilinear: t[(o,i),n] = sum_j W[o,i,j] v4[j,n]; then reduce over i -
    t = jnp.dot(blw2_ref[...], v4, preferred_element_type=jnp.float32)  # (64,128)
    rows = [jnp.sum(v1 * t[C * o:C * (o + 1), :], axis=0, keepdims=True)
            for o in range(C)]                                  # 8 x (1, 128)
    out_ref[...] = jnp.concatenate(rows, axis=0) + blb_ref[...]  # (8, 128)


@jax.jit
def model_forward(x1, x2, cw, cb, gamma, beta, blw, blb):
    f32 = jnp.float32
    # -------- wrapper-side layout plumbing (pure XLA glue) -------------------
    x1p = jnp.pad(x1, ((0, 0), (0, 0), (1, 1), (1, 1)))          # (B,3,HP,WP)
    # x1rep[ci, w, n=(b,h,c)] = x1p[b, ci, h, w]   (replicated over c)
    x1t = jnp.transpose(x1p, (1, 3, 0, 2))                       # (CIN, WP, B, HP)
    x1rep = jnp.broadcast_to(x1t[:, :, :, :, None],
                             (CIN, WP, B, HP, C)).reshape(CIN, WP, NLANE)

    lane = jnp.arange(NLANE)
    c_idx = lane % C            # channel of each lane
    g_idx = lane // C           # pixel-group (b,h) of each lane
    gchan = (c_idx[:, None] == c_idx[None, :]).astype(f32)       # (128,128)
    ggrp = (g_idx[:, None] == g_idx[None, :]).astype(f32)        # (128,128)

    # per-lane parameter vectors, stacked into one (8,128) VMEM slab
    cw_lane = cw[c_idx, :].T                                     # (CIN, 128)
    cb_lane = cb[c_idx][None, :]
    gamma_lane = gamma[c_idx][None, :]
    beta_lane = beta[c_idx][None, :]
    lane_params = jnp.concatenate(
        [cw_lane, cb_lane, gamma_lane, beta_lane,
         jnp.zeros((8 - CIN - 3, NLANE), f32)], axis=0)          # (8, 128)

    # block-diagonal x2:  bd[(b,h,c), (b',m,c')] = x2[b,c,m,h] * δbb' * δcc'
    eye_b = jnp.eye(B, dtype=f32)
    eye_c = jnp.eye(C, dtype=f32)
    bd = jnp.einsum('bcmh,bB,cC->bhcBmC', x2.astype(f32), eye_b, eye_c
                    ).reshape(NLANE, B * M * C)                  # (128, 128)

    blw2 = blw.reshape(C * C, C)                                 # (64, 8)
    blb_lane = jnp.broadcast_to(blb.reshape(C, 1), (C, NLANE))   # (8, 128)

    vmem = pl.BlockSpec(memory_space=pltpu.MemorySpace.VMEM)
    out = pl.pallas_call(
        fused_kernel,
        out_shape=jax.ShapeDtypeStruct((C, NLANE), f32),
        in_specs=[vmem,    # lane_params (8,128)
                  vmem,    # x1rep       (3,8,128)
                  vmem,    # gchan       (128,128)
                  vmem,    # ggrp        (128,128)
                  vmem,    # bd          (128,128)
                  vmem,    # blw2        (64,8)
                  vmem],   # blb_lane    (8,128)
        out_specs=vmem,
    )(lane_params, x1rep, gchan, ggrp, bd, blw2, blb_lane)

    # out[o, b*64 + h*8 + c] = v5[b, c, h, o]  ->  (B, C, HP, C)
    return jnp.transpose(out.reshape(C, B, HP, C), (1, 3, 2, 0))


if __name__ == "__main__":
    key = jax.random.PRNGKey(0)
    k_x1, k_x2, k_cw, k_cb, k_blw, k_blb = jax.random.split(key, 6)

    # Inputs (small shapes consistent with the forward pass; see layout note).
    x1 = jax.random.normal(k_x1, (B, CIN, H, W), dtype=jnp.float32)
    x2 = jax.random.normal(k_x2, (B, C, M, HP), dtype=jnp.float32)

    # Deterministic parameter init (shapes from the module's __init__).
    cw = 0.3 * jax.random.normal(k_cw, (C, CIN), dtype=jnp.float32)   # Conv2d(3,8,1) weight
    cb = 0.1 * jax.random.normal(k_cb, (C,), dtype=jnp.float32)       # Conv2d bias
    gamma = jnp.ones((C,), dtype=jnp.float32)                         # BatchNorm2d weight
    beta = jnp.zeros((C,), dtype=jnp.float32)                         # BatchNorm2d bias
    blw = 0.2 * jax.random.normal(k_blw, (C, C, C), dtype=jnp.float32)  # Bilinear(8,8,8) weight
    blb = 0.1 * jax.random.normal(k_blb, (1, C), dtype=jnp.float32)     # Bilinear bias

    out = model_forward(x1, x2, cw, cb, gamma, beta, blw, blb)
    out = jax.block_until_ready(out)

    assert out.shape == (B, C, HP, C)
    assert bool(jnp.all(jnp.isfinite(out)))
    print("KERNEL_OK")
</pallas_src>

<mosaic_0001>
module attributes {stable_mosaic.version = 11 : i64} {
  func.func @fused_kernel(%arg0: memref<8x128xf32, #tpu.memory_space<vmem>>, %arg1: memref<3x8x128xf32, #tpu.memory_space<vmem>>, %arg2: memref<128x128xf32, #tpu.memory_space<vmem>>, %arg3: memref<128x128xf32, #tpu.memory_space<vmem>>, %arg4: memref<128x128xf32, #tpu.memory_space<vmem>>, %arg5: memref<64x8xf32, #tpu.memory_space<vmem>>, %arg6: memref<8x128xf32, #tpu.memory_space<vmem>>, %arg7: memref<8x128xf32, #tpu.memory_space<vmem>>) attributes {dimension_semantics = [], scalar_prefetch = 0 : i64, scratch_operands = 0 : i64, tpu.core_type = #tpu.core_type<tc>} {
    %c0 = arith.constant 0 : index
    %c0_0 = arith.constant 0 : index
    %0 = vector.load %arg0[%c0, %c0_0] : memref<8x128xf32, #tpu.memory_space<vmem>>, vector<8x128xf32>
    %1 = vector.extract_strided_slice %0 {offsets = [0, 0], sizes = [1, 128], strides = [1, 1]} : vector<8x128xf32> to vector<1x128xf32>
    %c0_1 = arith.constant 0 : index
    %c0_2 = arith.constant 0 : index
    %c0_3 = arith.constant 0 : index
    %2 = vector.load %arg1[%c0_1, %c0_2, %c0_3] : memref<3x8x128xf32, #tpu.memory_space<vmem>>, vector<1x8x128xf32>
    %3 = vector.shape_cast %2 : vector<1x8x128xf32> to vector<8x128xf32>
    %4 = vector.broadcast %1 : vector<1x128xf32> to vector<8x128xf32>
    %5 = arith.mulf %4, %3 : vector<8x128xf32>
    %6 = vector.extract_strided_slice %0 {offsets = [1, 0], sizes = [1, 128], strides = [1, 1]} : vector<8x128xf32> to vector<1x128xf32>
    %c1 = arith.constant 1 : index
    %c0_4 = arith.constant 0 : index
    %c0_5 = arith.constant 0 : index
    %7 = vector.load %arg1[%c1, %c0_4, %c0_5] : memref<3x8x128xf32, #tpu.memory_space<vmem>>, vector<1x8x128xf32>
    %8 = vector.shape_cast %7 : vector<1x8x128xf32> to vector<8x128xf32>
    %9 = vector.broadcast %6 : vector<1x128xf32> to vector<8x128xf32>
    %10 = arith.mulf %9, %8 : vector<8x128xf32>
    %11 = arith.addf %5, %10 : vector<8x128xf32>
    %12 = vector.extract_strided_slice %0 {offsets = [2, 0], sizes = [1, 128], strides = [1, 1]} : vector<8x128xf32> to vector<1x128xf32>
    %c2 = arith.constant 2 : index
    %c0_6 = arith.constant 0 : index
    %c0_7 = arith.constant 0 : index
    %13 = vector.load %arg1[%c2, %c0_6, %c0_7] : memref<3x8x128xf32, #tpu.memory_space<vmem>>, vector<1x8x128xf32>
    %14 = vector.shape_cast %13 : vector<1x8x128xf32> to vector<8x128xf32>
    %15 = vector.broadcast %12 : vector<1x128xf32> to vector<8x128xf32>
    %16 = arith.mulf %15, %14 : vector<8x128xf32>
    %17 = arith.addf %11, %16 : vector<8x128xf32>
    %18 = vector.extract_strided_slice %0 {offsets = [3, 0], sizes = [1, 128], strides = [1, 1]} : vector<8x128xf32> to vector<1x128xf32>
    %19 = vector.broadcast %18 : vector<1x128xf32> to vector<8x128xf32>
    %20 = arith.addf %17, %19 : vector<8x128xf32>
    %c0_8 = arith.constant 0 : index
    %c0_9 = arith.constant 0 : index
    %21 = vector.load %arg2[%c0_8, %c0_9] : memref<128x128xf32, #tpu.memory_space<vmem>>, vector<128x128xf32>
    %cst = arith.constant dense<0.000000e+00> : vector<8x128xf32>
    %22 = tpu.matmul %20, %21, %cst {dimension_numbers = #tpu.dot_dimension_numbers<[1], [0], [0], [1], [0, 0, 1, 1], [], []>} : vector<8x128xf32>, vector<128x128xf32>, vector<8x128xf32> -> vector<8x128xf32>
    %cst_10 = arith.constant dense<0.000000e+00> : vector<128xf32>
    %23 = vector.multi_reduction <add>, %22, %cst_10 [0] : vector<8x128xf32> to vector<128xf32>
    %24 = vector.shape_cast %23 : vector<128xf32> to vector<1x128xf32>
    %cst_11 = arith.constant 7.812500e-03 : f32
    %25 = vector.broadcast %cst_11 : f32 to vector<1x128xf32>
    %26 = arith.mulf %24, %25 : vector<1x128xf32>
    %27 = vector.broadcast %26 : vector<1x128xf32> to vector<8x128xf32>
    %28 = arith.subf %20, %27 : vector<8x128xf32>
    %29 = arith.mulf %28, %28 : vector<8x128xf32>
    %cst_12 = arith.constant dense<0.000000e+00> : vector<8x128xf32>
    %30 = tpu.matmul %29, %21, %cst_12 {dimension_numbers = #tpu.dot_dimension_numbers<[1], [0], [0], [1], [0, 0, 1, 1], [], []>} : vector<8x128xf32>, vector<128x128xf32>, vector<8x128xf32> -> vector<8x128xf32>
    %cst_13 = arith.constant dense<0.000000e+00> : vector<128xf32>
    %31 = vector.multi_reduction <add>, %30, %cst_13 [0] : vector<8x128xf32> to vector<128xf32>
    %32 = vector.shape_cast %31 : vector<128xf32> to vector<1x128xf32>
    %cst_14 = arith.constant 7.812500e-03 : f32
    %33 = vector.broadcast %cst_14 : f32 to vector<1x128xf32>
    %34 = arith.mulf %32, %33 : vector<1x128xf32>
    %35 = vector.extract_strided_slice %0 {offsets = [4, 0], sizes = [1, 128], strides = [1, 1]} : vector<8x128xf32> to vector<1x128xf32>
    %cst_15 = arith.constant 9.99999974E-6 : f32
    %36 = vector.broadcast %cst_15 : f32 to vector<1x128xf32>
    %37 = arith.addf %34, %36 : vector<1x128xf32>
    %38 = math.rsqrt %37 : vector<1x128xf32>
    %39 = arith.mulf %35, %38 : vector<1x128xf32>
    %40 = vector.broadcast %39 : vector<1x128xf32> to vector<8x128xf32>
    %41 = arith.mulf %28, %40 : vector<8x128xf32>
    %42 = vector.extract_strided_slice %0 {offsets = [5, 0], sizes = [1, 128], strides = [1, 1]} : vector<8x128xf32> to vector<1x128xf32>
    %43 = vector.broadcast %42 : vector<1x128xf32> to vector<8x128xf32>
    %44 = arith.addf %41, %43 : vector<8x128xf32>
    %c0_16 = arith.constant 0 : index
    %c0_17 = arith.constant 0 : index
    %45 = vector.load %arg3[%c0_16, %c0_17] : memref<128x128xf32, #tpu.memory_space<vmem>>, vector<128x128xf32>
    %cst_18 = arith.constant dense<0.000000e+00> : vector<8x128xf32>
    %46 = tpu.matmul %44, %45, %cst_18 {dimension_numbers = #tpu.dot_dimension_numbers<[1], [0], [0], [1], [0, 0, 1, 1], [], []>} : vector<8x128xf32>, vector<128x128xf32>, vector<8x128xf32> -> vector<8x128xf32>
    %cst_19 = arith.constant 1.250000e-01 : f32
    %47 = vector.broadcast %cst_19 : f32 to vector<8x128xf32>
    %48 = arith.mulf %46, %47 : vector<8x128xf32>
    %49 = arith.subf %44, %48 : vector<8x128xf32>
    %50 = math.exp %49 : vector<8x128xf32>
    %cst_20 = arith.constant dense<0.000000e+00> : vector<8x128xf32>
    %51 = tpu.matmul %50, %45, %cst_20 {dimension_numbers = #tpu.dot_dimension_numbers<[1], [0], [0], [1], [0, 0, 1, 1], [], []>} : vector<8x128xf32>, vector<128x128xf32>, vector<8x128xf32> -> vector<8x128xf32>
    %52 = tpu.reciprocal %51 {approx = true} : vector<8x128xf32> -> vector<8x128xf32>
    %53 = arith.mulf %50, %52 : vector<8x128xf32>
    %c0_21 = arith.constant 0 : index
    %c0_22 = arith.constant 0 : index
    %54 = vector.load %arg4[%c0_21, %c0_22] : memref<128x128xf32, #tpu.memory_space<vmem>>, vector<128x128xf32>
    %cst_23 = arith.constant dense<0.000000e+00> : vector<8x128xf32>
    %55 = tpu.matmul %53, %54, %cst_23 {dimension_numbers = #tpu.dot_dimension_numbers<[1], [0], [0], [1], [0, 0, 1, 1], [], []>} : vector<8x128xf32>, vector<128x128xf32>, vector<8x128xf32> -> vector<8x128xf32>
    %cst_24 = arith.constant 0.000000e+00 : f32
    %56 = vector.broadcast %cst_24 : f32 to vector<8x128xf32>
    %57 = arith.maximumf %55, %56 : vector<8x128xf32>
    %c0_25 = arith.constant 0 : index
    %c0_26 = arith.constant 0 : index
    %58 = vector.load %arg5[%c0_25, %c0_26] : memref<64x8xf32, #tpu.memory_space<vmem>>, vector<64x8xf32>
    %cst_27 = arith.constant dense<0.000000e+00> : vector<64x128xf32>
    %59 = tpu.matmul %58, %57, %cst_27 {dimension_numbers = #tpu.dot_dimension_numbers<[1], [0], [0], [1], [0, 0, 1, 1], [], []>} : vector<64x8xf32>, vector<8x128xf32>, vector<64x128xf32> -> vector<64x128xf32>
    %60 = vector.extract_strided_slice %59 {offsets = [0, 0], sizes = [8, 128], strides = [1, 1]} : vector<64x128xf32> to vector<8x128xf32>
    %61 = arith.mulf %20, %60 : vector<8x128xf32>
    %cst_28 = arith.constant dense<0.000000e+00> : vector<128xf32>
    %62 = vector.multi_reduction <add>, %61, %cst_28 [0] : vector<8x128xf32> to vector<128xf32>
    %63 = vector.shape_cast %62 : vector<128xf32> to vector<1x128xf32>
    %64 = vector.extract_strided_slice %59 {offsets = [8, 0], sizes = [8, 128], strides = [1, 1]} : vector<64x128xf32> to vector<8x128xf32>
    %65 = arith.mulf %20, %64 : vector<8x128xf32>
    %cst_29 = arith.constant dense<0.000000e+00> : vector<128xf32>
    %66 = vector.multi_reduction <add>, %65, %cst_29 [0] : vector<8x128xf32> to vector<128xf32>
    %67 = vector.shape_cast %66 : vector<128xf32> to vector<1x128xf32>
    %68 = vector.extract_strided_slice %59 {offsets = [16, 0], sizes = [8, 128], strides = [1, 1]} : vector<64x128xf32> to vector<8x128xf32>
    %69 = arith.mulf %20, %68 : vector<8x128xf32>
    %cst_30 = arith.constant dense<0.000000e+00> : vector<128xf32>
    %70 = vector.multi_reduction <add>, %69, %cst_30 [0] : vector<8x128xf32> to vector<128xf32>
    %71 = vector.shape_cast %70 : vector<128xf32> to vector<1x128xf32>
    %72 = vector.extract_strided_slice %59 {offsets = [24, 0], sizes = [8, 128], strides = [1, 1]} : vector<64x128xf32> to vector<8x128xf32>
    %73 = arith.mulf %20, %72 : vector<8x128xf32>
    %cst_31 = arith.constant dense<0.000000e+00> : vector<128xf32>
    %74 = vector.multi_reduction <add>, %73, %cst_31 [0] : vector<8x128xf32> to vector<128xf32>
    %75 = vector.shape_cast %74 : vector<128xf32> to vector<1x128xf32>
    %76 = vector.extract_strided_slice %59 {offsets = [32, 0], sizes = [8, 128], strides = [1, 1]} : vector<64x128xf32> to vector<8x128xf32>
    %77 = arith.mulf %20, %76 : vector<8x128xf32>
    %cst_32 = arith.constant dense<0.000000e+00> : vector<128xf32>
    %78 = vector.multi_reduction <add>, %77, %cst_32 [0] : vector<8x128xf32> to vector<128xf32>
    %79 = vector.shape_cast %78 : vector<128xf32> to vector<1x128xf32>
    %80 = vector.extract_strided_slice %59 {offsets = [40, 0], sizes = [8, 128], strides = [1, 1]} : vector<64x128xf32> to vector<8x128xf32>
    %81 = arith.mulf %20, %80 : vector<8x128xf32>
    %cst_33 = arith.constant dense<0.000000e+00> : vector<128xf32>
    %82 = vector.multi_reduction <add>, %81, %cst_33 [0] : vector<8x128xf32> to vector<128xf32>
    %83 = vector.shape_cast %82 : vector<128xf32> to vector<1x128xf32>
    %84 = vector.extract_strided_slice %59 {offsets = [48, 0], sizes = [8, 128], strides = [1, 1]} : vector<64x128xf32> to vector<8x128xf32>
    %85 = arith.mulf %20, %84 : vector<8x128xf32>
    %cst_34 = arith.constant dense<0.000000e+00> : vector<128xf32>
    %86 = vector.multi_reduction <add>, %85, %cst_34 [0] : vector<8x128xf32> to vector<128xf32>
    %87 = vector.shape_cast %86 : vector<128xf32> to vector<1x128xf32>
    %88 = vector.extract_strided_slice %59 {offsets = [56, 0], sizes = [8, 128], strides = [1, 1]} : vector<64x128xf32> to vector<8x128xf32>
    %89 = arith.mulf %20, %88 : vector<8x128xf32>
    %cst_35 = arith.constant dense<0.000000e+00> : vector<128xf32>
    %90 = vector.multi_reduction <add>, %89, %cst_35 [0] : vector<8x128xf32> to vector<128xf32>
    %91 = vector.shape_cast %90 : vector<128xf32> to vector<1x128xf32>
    %92 = tpu.concatenate %63, %67, %71, %75, %79, %83, %87, %91 in 0 : vector<1x128xf32>, vector<1x128xf32>, vector<1x128xf32>, vector<1x128xf32>, vector<1x128xf32>, vector<1x128xf32>, vector<1x128xf32>, vector<1x128xf32> -> vector<8x128xf32>
    %c0_36 = arith.constant 0 : index
    %c0_37 = arith.constant 0 : index
    %93 = vector.load %arg6[%c0_36, %c0_37] : memref<8x128xf32, #tpu.memory_space<vmem>>, vector<8x128xf32>
    %94 = arith.addf %92, %93 : vector<8x128xf32>
    %c0_38 = arith.constant 0 : index
    %c0_39 = arith.constant 0 : index
    %95 = vector.load %arg7[%c0_38, %c0_39] : memref<8x128xf32, #tpu.memory_space<vmem>>, vector<8x128xf32>
    tpu.vector_store %arg7[%c0_38, %c0_39], %94 {strides = array<i32>} : memref<8x128xf32, #tpu.memory_space<vmem>>, vector<8x128xf32>,
    return
  }
}

</mosaic_0001>

<llo_original>
// kernel: model_forward.1
$region0: #{model_forward.1}
  #allocation0 [shape = 'u32[]', space=smem, size = 0x4, offset = 0x4, fixed_abs, tag = 'smem constant byte address 0x4 - core index']
  #allocation1 [shape = 'u32[72,128]{1,0:T(1,128)}', space=vmem, size = 0x9000, scoped, tag = 'internal scratch']
  %s0 = inlined_call_operand.vmem [shape: f32[8,128], index: 0, kind: input, shape index: {}]
  %s1 = inlined_call_operand.vmem [shape: f32[3,8,128], index: 1, kind: input, shape index: {}]
  %s2 = inlined_call_operand.vmem [shape: f32[128,128], index: 2, kind: input, shape index: {}]
  %s3 = inlined_call_operand.vmem [shape: f32[128,128], index: 3, kind: input, shape index: {}]
  %s4 = inlined_call_operand.vmem [shape: f32[128,128], index: 4, kind: input, shape index: {}]
  %s5 = inlined_call_operand.vmem [shape: f32[64,8], index: 5, kind: input, shape index: {}]
  %s6 = inlined_call_operand.vmem [shape: f32[8,128], index: 6, kind: input, shape index: {}]
  %s7 = inlined_call_operand.vmem [shape: f32[8,128], index: 7, kind: output, shape index: {}]
  %s8 = sld [smem:[#allocation0]]
  $region38: #{model_forward.1} parent=0
    _
  %s10 = ssub.s32 1, %s8
  %s11 = scalar_select 0, %s10, %s8
  // Predicated region
  $region2: #{model_forward.1} parent=0 // pred_check
    _
  $region3: #{model_forward.1} parent=0 // pred_check_branch
    %13 = sbr.rel (0) target = $region5
  $region4: #{model_forward.1} parent=0 // pred_region
    _
  $region5: #{model_forward.1} parent=0 // pred_fallthru
    _
  // Predicated region
  $region6: #{model_forward.1} parent=0 // pred_check
    _
  $region7: #{model_forward.1} parent=0 // pred_check_branch
    %15 = sbr.rel (0) target = $region9
  $region8: #{model_forward.1} parent=0 // pred_region
    _
  $region9: #{model_forward.1} parent=0 // pred_fallthru
    _
  // Predicated region
  $region10: #{model_forward.1} parent=0 // pred_check
    _
  $region11: #{model_forward.1} parent=0 // pred_check_branch
    %17 = sbr.rel (0) target = $region13
  $region12: #{model_forward.1} parent=0 // pred_region
    _
  $region13: #{model_forward.1} parent=0 // pred_fallthru
    _
  // Predicated region
  $region14: #{model_forward.1} parent=0 // pred_check
    _
  $region15: #{model_forward.1} parent=0 // pred_check_branch
    %19 = sbr.rel (0) target = $region17
  $region16: #{model_forward.1} parent=0 // pred_region
    _
  $region17: #{model_forward.1} parent=0 // pred_fallthru
    _
  // Predicated region
  $region18: #{model_forward.1} parent=0 // pred_check
    _
  $region19: #{model_forward.1} parent=0 // pred_check_branch
    %21 = sbr.rel (0) target = $region21
  $region20: #{model_forward.1} parent=0 // pred_region
    _
  $region21: #{model_forward.1} parent=0 // pred_fallthru
    _
  // Predicated region
  $region22: #{model_forward.1} parent=0 // pred_check
    _
  $region23: #{model_forward.1} parent=0 // pred_check_branch
    %23 = sbr.rel (0) target = $region25
  $region24: #{model_forward.1} parent=0 // pred_region
    _
  $region25: #{model_forward.1} parent=0 // pred_fallthru
    _
  // Predicated region
  $region26: #{model_forward.1} parent=0 // pred_check
    _
  $region27: #{model_forward.1} parent=0 // pred_check_branch
    %25 = sbr.rel (0) target = $region29
  $region28: #{model_forward.1} parent=0 // pred_region
    _
  $region29: #{model_forward.1} parent=0 // pred_fallthru
    _
  %v26 = vld [vmem:[%s0] sm:$0xff]
  %v27 = vld [vmem:[%s1] sm:$0xff]
  %v28 = vperm.slane %v26, 0
  %v29 = vmul.f32 %v28, %v27
  %s30 = scalar_lea.vmem %s1, 8
  %v31 = vld [vmem:[%s30] sm:$0xff]
  %v32 = vperm.slane %v26, 1
  %v33 = vmul.f32 %v32, %v31
  %v34 = vadd.f32 %v29, %v33
  %s35 = scalar_lea.vmem %s1, 16
  %v36 = vld [vmem:[%s35] sm:$0xff]
  %v37 = vperm.slane %v26, 2
  %v38 = vmul.f32 %v37, %v36
  %v39 = vadd.f32 %v34, %v38
  %v40 = vperm.slane %v26, 3
  %v41 = vadd.f32 %v39, %v40
  %v42 = vld [vmem:[%s2] sm:$0xff]
  %v43 = vld [vmem:[%s2 + $0x8] sm:$0xff]
  %v44 = vld [vmem:[%s2 + $0x10] sm:$0xff]
  %v45 = vld [vmem:[%s2 + $0x18] sm:$0xff]
  %v46 = vld [vmem:[%s2 + $0x20] sm:$0xff]
  %v47 = vld [vmem:[%s2 + $0x28] sm:$0xff]
  %v48 = vld [vmem:[%s2 + $0x30] sm:$0xff]
  %v49 = vld [vmem:[%s2 + $0x38] sm:$0xff]
  %v50 = vld [vmem:[%s2 + $0x40] sm:$0xff]
  %v51 = vld [vmem:[%s2 + $0x48] sm:$0xff]
  %v52 = vld [vmem:[%s2 + $0x50] sm:$0xff]
  %v53 = vld [vmem:[%s2 + $0x58] sm:$0xff]
  %v54 = vld [vmem:[%s2 + $0x60] sm:$0xff]
  %v55 = vld [vmem:[%s2 + $0x68] sm:$0xff]
  %v56 = vld [vmem:[%s2 + $0x70] sm:$0xff]
  %v57 = vld [vmem:[%s2 + $0x78] sm:$0xff]
  %58 = vmatpush.msra.mxu0 %v57
  %59 = vmatpush.msra.mxu0 %v56
  %60 = vmatpush.msra.mxu0 %v55
  %61 = vmatpush.msra.mxu0 %v54
  %62 = vmatpush.msra.mxu0 %v53
  %63 = vmatpush.msra.mxu0 %v52
  %64 = vmatpush.msra.mxu0 %v51
  %65 = vmatpush.msra.mxu0 %v50
  %66 = vmatpush.msra.mxu0 %v49
  %67 = vmatpush.msra.mxu0 %v48
  %68 = vmatpush.msra.mxu0 %v47
  %69 = vmatpush.msra.mxu0 %v46
  %70 = vmatpush.msra.mxu0 %v45
  %71 = vmatpush.msra.mxu0 %v44
  %72 = vmatpush.msra.mxu0 %v43
  %73 = vmatpush.msra.mxu0 %v42
  %74 = vmatmul.f32.gmra.mxu0 %v41
  %v75 = vpop.f32.mrf.mxu0
  %v76 = vadd.f32 0.0, %v75
  %77 = vdwg.mxu0
  %v78 = vrot.slane %v76, 4
  %v79 = vadd.f32 %v76, %v78
  %v80 = vrot.slane %v79, 2
  %v81 = vadd.f32 %v79, %v80
  %v82 = vrot.slane %v81, 1
  %v83 = vadd.f32 %v81, %v82
  %v84 = vmul.f32 %v83, 0.0078125
  %v85 = vsub.f32 %v41, %v84
  %v86 = vmul.f32 %v85, %v85
  %87 = vmatpush.msra.mxu0 %v57
  %88 = vmatpush.msra.mxu0 %v56
  %89 = vmatpush.msra.mxu0 %v55
  %90 = vmatpush.msra.mxu0 %v54
  %91 = vmatpush.msra.mxu0 %v53
  %92 = vmatpush.msra.mxu0 %v52
  %93 = vmatpush.msra.mxu0 %v51
  %94 = vmatpush.msra.mxu0 %v50
  %95 = vmatpush.msra.mxu0 %v49
  %96 = vmatpush.msra.mxu0 %v48
  %97 = vmatpush.msra.mxu0 %v47
  %98 = vmatpush.msra.mxu0 %v46
  %99 = vmatpush.msra.mxu0 %v45
  %100 = vmatpush.msra.mxu0 %v44
  %101 = vmatpush.msra.mxu0 %v43
  %102 = vmatpush.msra.mxu0 %v42
  %103 = vmatmul.f32.gmra.mxu0 %v86
  %v104 = vpop.f32.mrf.mxu0
  %v105 = vadd.f32 0.0, %v104
  %106 = vdwg.mxu0
  %v107 = vrot.slane %v105, 4
  %v108 = vadd.f32 %v105, %v107
  %v109 = vrot.slane %v108, 2
  %v110 = vadd.f32 %v108, %v109
  %v111 = vrot.slane %v110, 1
  %v112 = vadd.f32 %v110, %v111
  %v113 = vmul.f32 %v112, 0.0078125
  %v114 = vadd.f32 %v113, 1e-05
  %v115 = vrsqrt.pop %v114
  %v116 = vmul.f32 %v115, %v114
  %v117 = vmul.f32 %v116, %v115
  %v118 = vmul.f32 0.5, %v117
  %v119 = vsub.f32 1.5, %v118
  %v120 = vmul.f32 %v115, %v119
  %vm121 = vweird.f32 %v114
  %vm122 = vweird.f32 %v115
  %vm123 = vmor %vm121, %vm122
  %v124 = vsel %vm123, %v115, %v120
  %v125 = vmul.f32 %v26, %v124
  %v126 = vperm.slane %v125, 4
  %v127 = vmul.f32 %v85, %v126
  %v128 = vperm.slane %v26, 5
  %v129 = vadd.f32 %v127, %v128
  %v130 = vld [vmem:[%s3] sm:$0xff]
  %v131 = vld [vmem:[%s3 + $0x8] sm:$0xff]
  %v132 = vld [vmem:[%s3 + $0x10] sm:$0xff]
  %v133 = vld [vmem:[%s3 + $0x18] sm:$0xff]
  %v134 = vld [vmem:[%s3 + $0x20] sm:$0xff]
  %v135 = vld [vmem:[%s3 + $0x28] sm:$0xff]
  %v136 = vld [vmem:[%s3 + $0x30] sm:$0xff]
  %v137 = vld [vmem:[%s3 + $0x38] sm:$0xff]
  %v138 = vld [vmem:[%s3 + $0x40] sm:$0xff]
  %v139 = vld [vmem:[%s3 + $0x48] sm:$0xff]
  %v140 = vld [vmem:[%s3 + $0x50] sm:$0xff]
  %v141 = vld [vmem:[%s3 + $0x58] sm:$0xff]
  %v142 = vld [vmem:[%s3 + $0x60] sm:$0xff]
  %v143 = vld [vmem:[%s3 + $0x68] sm:$0xff]
  %v144 = vld [vmem:[%s3 + $0x70] sm:$0xff]
  %v145 = vld [vmem:[%s3 + $0x78] sm:$0xff]
  %146 = vmatpush.msra.mxu0 %v145
  %147 = vmatpush.msra.mxu0 %v144
  %148 = vmatpush.msra.mxu0 %v143
  %149 = vmatpush.msra.mxu0 %v142
  %150 = vmatpush.msra.mxu0 %v141
  %151 = vmatpush.msra.mxu0 %v140
  %152 = vmatpush.msra.mxu0 %v139
  %153 = vmatpush.msra.mxu0 %v138
  %154 = vmatpush.msra.mxu0 %v137
  %155 = vmatpush.msra.mxu0 %v136
  %156 = vmatpush.msra.mxu0 %v135
  %157 = vmatpush.msra.mxu0 %v134
  %158 = vmatpush.msra.mxu0 %v133
  %159 = vmatpush.msra.mxu0 %v132
  %160 = vmatpush.msra.mxu0 %v131
  %161 = vmatpush.msra.mxu0 %v130
  %162 = vmatmul.f32.gmra.mxu0 %v129
  %v163 = vpop.f32.mrf.mxu0
  %v164 = vadd.f32 0.0, %v163
  %165 = vdwg.mxu0
  %v166 = vmul.f32 %v164, 0.125
  %v167 = vsub.f32 %v129, %v166
  %v168 = vmul.f32 %v167, 1.442695
  %v169 = vpow.pop %v168
  %170 = vmatpush.msra.mxu0 %v145
  %171 = vmatpush.msra.mxu0 %v144
  %172 = vmatpush.msra.mxu0 %v143
  %173 = vmatpush.msra.mxu0 %v142
  %174 = vmatpush.msra.mxu0 %v141
  %175 = vmatpush.msra.mxu0 %v140
  %176 = vmatpush.msra.mxu0 %v139
  %177 = vmatpush.msra.mxu0 %v138
  %178 = vmatpush.msra.mxu0 %v137
  %179 = vmatpush.msra.mxu0 %v136
  %180 = vmatpush.msra.mxu0 %v135
  %181 = vmatpush.msra.mxu0 %v134
  %182 = vmatpush.msra.mxu0 %v133
  %183 = vmatpush.msra.mxu0 %v132
  %184 = vmatpush.msra.mxu0 %v131
  %185 = vmatpush.msra.mxu0 %v130
  %186 = vmatmul.f32.gmra.mxu0 %v169
  %v187 = vpop.f32.mrf.mxu0
  %v188 = vadd.f32 0.0, %v187
  %189 = vdwg.mxu0
  %v190 = vrcp.pop %v188
  %v191 = vmul.f32 %v169, %v190
  %v192 = vld [vmem:[%s4] sm:$0xff]
  %v193 = vld [vmem:[%s4 + $0x8] sm:$0xff]
  %v194 = vld [vmem:[%s4 + $0x10] sm:$0xff]
  %v195 = vld [vmem:[%s4 + $0x18] sm:$0xff]
  %v196 = vld [vmem:[%s4 + $0x20] sm:$0xff]
  %v197 = vld [vmem:[%s4 + $0x28] sm:$0xff]
  %v198 = vld [vmem:[%s4 + $0x30] sm:$0xff]
  %v199 = vld [vmem:[%s4 + $0x38] sm:$0xff]
  %v200 = vld [vmem:[%s4 + $0x40] sm:$0xff]
  %v201 = vld [vmem:[%s4 + $0x48] sm:$0xff]
  %v202 = vld [vmem:[%s4 + $0x50] sm:$0xff]
  %v203 = vld [vmem:[%s4 + $0x58] sm:$0xff]
  %v204 = vld [vmem:[%s4 + $0x60] sm:$0xff]
  %v205 = vld [vmem:[%s4 + $0x68] sm:$0xff]
  %v206 = vld [vmem:[%s4 + $0x70] sm:$0xff]
  %v207 = vld [vmem:[%s4 + $0x78] sm:$0xff]
  %208 = vmatpush.msra.mxu0 %v207
  %209 = vmatpush.msra.mxu0 %v206
  %210 = vmatpush.msra.mxu0 %v205
  %211 = vmatpush.msra.mxu0 %v204
  %212 = vmatpush.msra.mxu0 %v203
  %213 = vmatpush.msra.mxu0 %v202
  %214 = vmatpush.msra.mxu0 %v201
  %215 = vmatpush.msra.mxu0 %v200
  %216 = vmatpush.msra.mxu0 %v199
  %217 = vmatpush.msra.mxu0 %v198
  %218 = vmatpush.msra.mxu0 %v197
  %219 = vmatpush.msra.mxu0 %v196
  %220 = vmatpush.msra.mxu0 %v195
  %221 = vmatpush.msra.mxu0 %v194
  %222 = vmatpush.msra.mxu0 %v193
  %223 = vmatpush.msra.mxu0 %v192
  %224 = vmatmul.f32.gmra.mxu0 %v191
  %v225 = vpop.f32.mrf.mxu0
  %v226 = vadd.f32 0.0, %v225
  %227 = vdwg.mxu0
  %v228 = vmax.f32 %v226, 0.0
  %v229 = vld [vmem:[%s5] sm:$0xff]
  %v230 = vld [vmem:[%s5 + $0x8] sm:$0xff]
  %v231 = vld [vmem:[%s5 + $0x10] sm:$0xff]
  %v232 = vld [vmem:[%s5 + $0x18] sm:$0xff]
  %v233 = vld [vmem:[%s5 + $0x20] sm:$0xff]
  %v234 = vld [vmem:[%s5 + $0x28] sm:$0xff]
  %v235 = vld [vmem:[%s5 + $0x30] sm:$0xff]
  %v236 = vld [vmem:[%s5 + $0x38] sm:$0xff]
  %vm237 = vcmask 64512
  %v239 = vsel %vm237, %v229, 0
  %v242 = vsel %vm237, %v230, 0
  %v245 = vsel %vm237, %v231, 0
  %v248 = vsel %vm237, %v232, 0
  %v251 = vsel %vm237, %v233, 0
  %v254 = vsel %vm237, %v234, 0
  %v257 = vsel %vm237, %v235, 0
  %v260 = vsel %vm237, %v236, 0
  %262 = vmatpush.msra.mxu0 0.0
  %263 = vmatpush.msra.mxu0 0.0
  %264 = vmatpush.msra.mxu0 0.0
  %265 = vmatpush.msra.mxu0 0.0
  %266 = vmatpush.msra.mxu0 0.0
  %267 = vmatpush.msra.mxu0 0.0
  %268 = vmatpush.msra.mxu0 0.0
  %269 = vmatpush.msra.mxu0 0.0
  %270 = vmatpush.msra.mxu0 0.0
  %271 = vmatpush.msra.mxu0 0.0
  %272 = vmatpush.msra.mxu0 0.0
  %273 = vmatpush.msra.mxu0 0.0
  %274 = vmatpush.msra.mxu0 0.0
  %275 = vmatpush.msra.mxu0 0.0
  %276 = vmatpush.msra.mxu0 0.0
  %277 = vmatpush.msra.mxu0 %v228
  %278 = vmatmul.f32.gmra.mxu0 %v239
  %v279 = vpop.f32.mrf.mxu0
  %v280 = vadd.f32 0.0, %v279
  %281 = vmatmul.f32.gmra.mxu0 %v242
  %v282 = vpop.f32.mrf.mxu0
  %v283 = vadd.f32 0.0, %v282
  %284 = vmatmul.f32.gmra.mxu0 %v245
  %v285 = vpop.f32.mrf.mxu0
  %v286 = vadd.f32 0.0, %v285
  %287 = vmatmul.f32.gmra.mxu0 %v248
  %v288 = vpop.f32.mrf.mxu0
  %v289 = vadd.f32 0.0, %v288
  %290 = vmatmul.f32.gmra.mxu0 %v251
  %v291 = vpop.f32.mrf.mxu0
  %v292 = vadd.f32 0.0, %v291
  %293 = vmatmul.f32.gmra.mxu0 %v254
  %v294 = vpop.f32.mrf.mxu0
  %v295 = vadd.f32 0.0, %v294
  %296 = vmatmul.f32.gmra.mxu0 %v257
  %v297 = vpop.f32.mrf.mxu0
  %v298 = vadd.f32 0.0, %v297
  %299 = vmatmul.f32.gmra.mxu0 %v260
  %v300 = vpop.f32.mrf.mxu0
  %v301 = vadd.f32 0.0, %v300
  %302 = vdwg.mxu0
  %v303 = vmul.f32 %v41, %v280
  %v304 = vrot.slane %v303, 4
  %v305 = vadd.f32 %v303, %v304
  %v306 = vrot.slane %v305, 2
  %v307 = vadd.f32 %v305, %v306
  %v308 = vrot.slane %v307, 1
  %v309 = vadd.f32 %v307, %v308
  %v310 = vmul.f32 %v41, %v283
  %v311 = vrot.slane %v310, 4
  %v312 = vadd.f32 %v310, %v311
  %v313 = vrot.slane %v312, 2
  %v314 = vadd.f32 %v312, %v313
  %v315 = vrot.slane %v314, 1
  %v316 = vadd.f32 %v314, %v315
  %v317 = vmul.f32 %v41, %v286
  %v318 = vrot.slane %v317, 4
  %v319 = vadd.f32 %v317, %v318
  %v320 = vrot.slane %v319, 2
  %v321 = vadd.f32 %v319, %v320
  %v322 = vrot.slane %v321, 1
  %v323 = vadd.f32 %v321, %v322
  %v324 = vmul.f32 %v41, %v289
  %v325 = vrot.slane %v324, 4
  %v326 = vadd.f32 %v324, %v325
  %v327 = vrot.slane %v326, 2
  %v328 = vadd.f32 %v326, %v327
  %v329 = vrot.slane %v328, 1
  %v330 = vadd.f32 %v328, %v329
  %v331 = vmul.f32 %v41, %v292
  %v332 = vrot.slane %v331, 4
  %v333 = vadd.f32 %v331, %v332
  %v334 = vrot.slane %v333, 2
  %v335 = vadd.f32 %v333, %v334
  %v336 = vrot.slane %v335, 1
  %v337 = vadd.f32 %v335, %v336
  %v338 = vmul.f32 %v41, %v295
  %v339 = vrot.slane %v338, 4
  %v340 = vadd.f32 %v338, %v339
  %v341 = vrot.slane %v340, 2
  %v342 = vadd.f32 %v340, %v341
  %v343 = vrot.slane %v342, 1
  %v344 = vadd.f32 %v342, %v343
  %v345 = vmul.f32 %v41, %v298
  %v346 = vrot.slane %v345, 4
  %v347 = vadd.f32 %v345, %v346
  %v348 = vrot.slane %v347, 2
  %v349 = vadd.f32 %v347, %v348
  %v350 = vrot.slane %v349, 1
  %v351 = vadd.f32 %v349, %v350
  %v352 = vmul.f32 %v41, %v301
  %v353 = vrot.slane %v352, 4
  %v354 = vadd.f32 %v352, %v353
  %v355 = vrot.slane %v354, 2
  %v356 = vadd.f32 %v354, %v355
  %v357 = vrot.slane %v356, 1
  %v358 = vadd.f32 %v356, %v357
  %vm359 = vcmask 1040384
  %v360 = vsel %vm359, %v309, %v316
  %vm361 = vcmask 1041408
  %v362 = vsel %vm361, %v360, %v323
  %vm363 = vcmask 1042432
  %v364 = vsel %vm363, %v362, %v330
  %vm365 = vcmask 1043456
  %v366 = vsel %vm365, %v364, %v337
  %vm367 = vcmask 1044480
  %v368 = vsel %vm367, %v366, %v344
  %vm369 = vcmask 1045504
  %v370 = vsel %vm369, %v368, %v351
  %vm371 = vcmask 1046528
  %v372 = vsel %vm371, %v370, %v358
  %v373 = vld [vmem:[%s6] sm:$0xff]
  %v374 = vadd.f32 %v372, %v373
  %375 = vst [vmem:[%s7] sm:$0xff] %v374
  // Predicated region
  $region30: #{model_forward.1} parent=0 // pred_check
    _
  $region31: #{model_forward.1} parent=0 // pred_check_branch
    %377 = sbr.rel (0) target = $region33
  $region32: #{model_forward.1} parent=0 // pred_region
    _
  $region33: #{model_forward.1} parent=0 // pred_fallthru
    _
  // Predicated region
  $region34: #{model_forward.1} parent=0 // pred_check
    _
  $region35: #{model_forward.1} parent=0 // pred_check_branch
    %379 = sbr.rel (0) target = $region37
  $region36: #{model_forward.1} parent=0 // pred_region
    _
  $region37: #{model_forward.1} parent=0 // pred_fallthru
    _

</llo_original>
